<compile_context>
chip_gen: v5e
topology: v5e:2x2
jax: 0.10.0
libtpu: 0.0.40
codegen_flags: <defaults>
</compile_context>

<pallas_src>
import jax
import jax.numpy as jnp
from jax.experimental import pallas as pl
from jax.experimental.pallas import tpu as pltpu

_LANE = 128
# Scoped-VMEM budget used for tile sizing. 24 MiB fit budget + 32 MiB explicit
# limit is safe on v5e/v6e (128 MiB physical) and v7x (64 MiB physical).
_VMEM_BUDGET_BYTES = 24 * 1024 * 1024
_VMEM_LIMIT_BYTES = 32 * 1024 * 1024


def _decoder_kernel(x_ref, w_ref, b_ref, o_ref):
    # x_ref: (tm, K), w_ref: (K, N), b_ref: (1, N), o_ref: (tm, N)
    acc = jnp.dot(x_ref[...], w_ref[...], preferred_element_type=jnp.float32)
    o_ref[...] = (acc + b_ref[...].astype(jnp.float32)).astype(o_ref.dtype)


def prepare_decoder_params(weight, bias):
    """One-time parameter prep (hoist out of the per-step hot path).

    weight: (emb_dim, bottleneck_dim)  -- PyTorch nn.Linear layout (N, K)
    bias:   (emb_dim,)

    Returns (w_t, bias_2d) with w_t: (K, N) MXU-ready (no padding: the kernel
    writes the true output width directly).
    """
    w_t = jnp.asarray(weight).T          # (K, N), one-time transpose
    b2d = jnp.asarray(bias).reshape(1, -1)
    return w_t, b2d


def _sublane_align(dtype):
    # Packed sublane-tile height: f32 -> 8, bf16 -> 16, int8/fp8 -> 32.
    return max(8, 32 // jnp.dtype(dtype).itemsize)


def _choose_tm(B, K, N, x_dtype, w_dtype):
    """Pick a batch tile: multiple of the packed sublane height, divides B,
    <= 512, fits the scoped-VMEM budget counting double-buffered copies of
    every BlockSpec input (x, out, weight, bias), and — when B is big enough —
    leaves >=2 grid steps so the parallel grid axis can use both v7x cores."""
    sub = _sublane_align(x_dtype)
    if B <= sub or B % sub != 0:
        return B  # full-array block is always legal

    x_item = jnp.dtype(x_dtype).itemsize
    w_item = jnp.dtype(w_dtype).itemsize

    def vmem_bytes(t):
        # Double-buffered x tile + out tile, double-buffered resident weight + bias.
        return (2 * (t * K + t * N) * x_item) + (2 * (K * N + N) * w_item)

    tm = min(B, 512)
    # Prefer a grid of >=2 steps so "parallel" can shard across v7x's 2 TCs.
    if B >= 2 * sub:
        half = (B // 2) - ((B // 2) % sub)
        if half >= sub:
            tm = min(tm, half)
    tm -= tm % sub
    while tm > sub and (B % tm != 0 or vmem_bytes(tm) > _VMEM_BUDGET_BYTES):
        tm -= sub
    return max(tm, sub)


def decoder_forward_prepared(x, w_t, b2d, *, tm=None):
    """x: (B, K); w_t: (K, N); b2d: (1, N). Returns (B, N) = x @ w_t + b."""
    B, K = x.shape
    K2, N = w_t.shape
    assert K == K2, "weight / input dim mismatch"

    if tm is None:
        tm = _choose_tm(B, K, N, x.dtype, w_t.dtype)
    sub = _sublane_align(x.dtype)
    assert tm == B or (tm % sub == 0 and B % tm == 0), (
        "tm must equal B or be a sublane-aligned divisor of B")

    grid = (pl.cdiv(B, tm),)

    x_item = jnp.dtype(x.dtype).itemsize
    w_item = jnp.dtype(w_t.dtype).itemsize
    cost = pl.CostEstimate(
        flops=2 * B * K * N,
        transcendentals=0,
        bytes_accessed=(B * K + B * N) * x_item + (K * N + N) * w_item,
    )

    return pl.pallas_call(
        _decoder_kernel,
        out_shape=jax.ShapeDtypeStruct((B, N), x.dtype),
        grid_spec=pltpu.PrefetchScalarGridSpec(
            num_scalar_prefetch=0,
            grid=grid,
            in_specs=[
                pl.BlockSpec((tm, K), lambda i: (i, 0)),   # x tile
                pl.BlockSpec((K, N), lambda i: (0, 0)),    # resident weight (K, N)
                pl.BlockSpec((1, N), lambda i: (0, 0)),    # resident bias
            ],
            out_specs=pl.BlockSpec((tm, N), lambda i: (i, 0)),
        ),
        compiler_params=pltpu.CompilerParams(
            dimension_semantics=("parallel",),   # batch axis shards across TCs
            vmem_limit_bytes=_VMEM_LIMIT_BYTES,
        ),
        cost_estimate=cost,
    )(x, w_t, b2d)


def decoder_forward(x, weight, bias, *, tm=None):
    """Convenience wrapper: x @ weight.T + bias (torch.nn.Linear semantics).

    For repeated calls with the same parameters, call prepare_decoder_params
    once and use decoder_forward_prepared directly (avoids the per-call
    weight transpose)."""
    w_t, b2d = prepare_decoder_params(weight, bias)
    return decoder_forward_prepared(x, w_t, b2d, tm=tm)


if __name__ == "__main__":
    # Small shapes consistent with the module:
    #   emb_dim (output) = 64, emb_dim_autoenc (bottleneck, input) = 32, batch = 8
    batch = 8
    bottleneck_dim = 32   # params.emb_dim_autoenc
    emb_dim = 64          # params.emb_dim

    key = jax.random.PRNGKey(0)
    kx, kw, kb = jax.random.split(key, 3)

    x = jax.random.normal(kx, (batch, bottleneck_dim), dtype=jnp.float32)
    # Deterministic synthetic parameters (nn.Linear(bottleneck_dim, emb_dim) shapes).
    weight = jax.random.normal(kw, (emb_dim, bottleneck_dim), dtype=jnp.float32) * 0.1
    bias = jax.random.normal(kb, (emb_dim,), dtype=jnp.float32) * 0.1

    # Hoist parameter prep out of the "hot path" (done once).
    w_t, b2d = prepare_decoder_params(weight, bias)
    out = decoder_forward_prepared(x, w_t, b2d)
    out = jax.block_until_ready(out)

    # Reference check against plain JAX (same math as torch Linear).
    ref = x @ weight.T + bias
    assert out.shape == (batch, emb_dim)
    assert jnp.allclose(out, ref, atol=1e-5, rtol=1e-5)

    print("KERNEL_OK")
</pallas_src>

<mosaic_0001>
module attributes {stable_mosaic.version = 11 : i64} {
  func.func @_decoder_kernel(%arg0: i32, %arg1: memref<8x32xf32, #tpu.memory_space<vmem>>, %arg2: memref<32x64xf32, #tpu.memory_space<vmem>>, %arg3: memref<1x64xf32, #tpu.memory_space<vmem>>, %arg4: memref<8x64xf32, #tpu.memory_space<vmem>>) attributes {dimension_semantics = [#tpu.dimension_semantics<parallel>], iteration_bounds = array<i64: 1>, scalar_prefetch = 0 : i64, scratch_operands = 0 : i64, tpu.core_type = #tpu.core_type<tc>, window_params = [{transform_indices = @transform_0, window_bounds = array<i64: 8, 32>}, {pipeline_mode = #tpu.pipeline_mode<synchronous>, transform_indices = @transform_1, window_bounds = array<i64: 32, 64>}, {pipeline_mode = #tpu.pipeline_mode<synchronous>, transform_indices = @transform_2, window_bounds = array<i64: 1, 64>}, {transform_indices = @transform_3, window_bounds = array<i64: 8, 64>}]} {
    %c0 = arith.constant 0 : index
    %c0_0 = arith.constant 0 : index
    %0 = vector.load %arg1[%c0, %c0_0] : memref<8x32xf32, #tpu.memory_space<vmem>>, vector<8x32xf32>
    %c0_1 = arith.constant 0 : index
    %c0_2 = arith.constant 0 : index
    %1 = vector.load %arg2[%c0_1, %c0_2] : memref<32x64xf32, #tpu.memory_space<vmem>>, vector<32x64xf32>
    %cst = arith.constant dense<0.000000e+00> : vector<8x64xf32>
    %2 = tpu.matmul %0, %1, %cst {dimension_numbers = #tpu.dot_dimension_numbers<[1], [0], [0], [1], [0, 0, 1, 1], [], []>} : vector<8x32xf32>, vector<32x64xf32>, vector<8x64xf32> -> vector<8x64xf32>
    %c0_3 = arith.constant 0 : index
    %c0_4 = arith.constant 0 : index
    %3 = vector.load %arg3[%c0_3, %c0_4] : memref<1x64xf32, #tpu.memory_space<vmem>>, vector<1x64xf32>
    %4 = vector.broadcast %3 : vector<1x64xf32> to vector<8x64xf32>
    %5 = arith.addf %2, %4 : vector<8x64xf32>
    %c0_5 = arith.constant 0 : index
    %c0_6 = arith.constant 0 : index
    %6 = vector.load %arg4[%c0_5, %c0_6] : memref<8x64xf32, #tpu.memory_space<vmem>>, vector<8x64xf32>
    tpu.vector_store %arg4[%c0_5, %c0_6], %5 {strides = array<i32>} : memref<8x64xf32, #tpu.memory_space<vmem>>, vector<8x64xf32>,
    return
  }
  func.func @transform_0(%arg0: i32) -> (i32, i32) {
    %c0_i32 = arith.constant 0 : i32
    %c0_i32_0 = arith.constant 0 : i32
    return %arg0, %c0_i32 : i32, i32
  }
  func.func @transform_1(%arg0: i32) -> (i32, i32) {
    %c0_i32 = arith.constant 0 : i32
    %c0_i32_0 = arith.constant 0 : i32
    %c0_i32_1 = arith.constant 0 : i32
    return %c0_i32, %c0_i32_0 : i32, i32
  }
  func.func @transform_2(%arg0: i32) -> (i32, i32) {
    %c0_i32 = arith.constant 0 : i32
    %c0_i32_0 = arith.constant 0 : i32
    %c0_i32_1 = arith.constant 0 : i32
    return %c0_i32, %c0_i32_0 : i32, i32
  }
  func.func @transform_3(%arg0: i32) -> (i32, i32) {
    %c0_i32 = arith.constant 0 : i32
    %c0_i32_0 = arith.constant 0 : i32
    return %arg0, %c0_i32 : i32, i32
  }
}

</mosaic_0001>

<llo_original>
// kernel: tpu_custom_call.1
$region0: #{tpu_custom_call.1}
  #allocation0 [shape = 'u32[]', space=smem, size = 0x4, offset = 0x4, fixed_abs, tag = 'smem constant byte address 0x4 - core index']
  #allocation1 [shape = 'u32[72,128]{1,0:T(1,128)}', space=vmem, size = 0x9000, scoped, tag = 'internal scratch']
  %s0 = inlined_call_operand.hbm [shape: f32[8,32], index: 0, kind: input, shape index: {}]
  %s1 = inlined_call_operand.hbm [shape: f32[32,64], index: 1, kind: input, shape index: {}]
  %s2 = inlined_call_operand.vmem [shape: f32[1,64], index: 2, kind: input, shape index: {}]
  %s3 = inlined_call_operand.hbm [shape: f32[8,64], index: 3, kind: output, shape index: {}]
  %s4 = sld [smem:[#allocation0]]
  $region30: #{tpu_custom_call.1} parent=0
    _
  %s6 = ssub.s32 1, %s4
  %s7 = scalar_select 0, %s6, %s4
  $region1: #{tpu_custom_call.1} parent=0
    #allocation2 [shape = 'u8[4096]{0}', space=vmem, size = 0x1000, scoped, tag = 'input window, operand 0, single buffered']
    #allocation3 [shape = 's32[1]{0}', space=sflag, size = 0x4, scoped, tag = 'scoped memory for tpu_custom_call.1']
    #allocation4 [shape = 's32[1]{0}', space=sflag, size = 0x4, scoped, tag = 'scoped memory for tpu_custom_call.1']
    #allocation5 [shape = 'u8[16384]{0}', space=vmem, size = 0x4000, scoped, tag = 'input window, operand 1, single buffered']
    #allocation6 [shape = 's32[1]{0}', space=sflag, size = 0x4, scoped, tag = 'scoped memory for tpu_custom_call.1']
    #allocation7 [shape = 'u8[4096]{0}', space=vmem, size = 0x1000, scoped, tag = 'output window, operand 0, single buffered']
    %8 = vsyncpa [#allocation3], 0
    %9 = vsyncpa [#allocation6], 0
    %10 = vsyncpa [#allocation4], 0
    // Predicated region
    $region2: #{tpu_custom_call.1} parent=1 // pred_check
      _
    $region3: #{tpu_custom_call.1} parent=1 // pred_check_branch
      %12 = sbr.rel (0) target = $region5
    $region4: #{tpu_custom_call.1} parent=1 // pred_region
      %14 = vsyncadd [#allocation3], 0
      %s16 = sshll.u32 %s0, 4
      %s17 = int_to_ptr.hbm [resolvable:$true] %s16
      %s18 = sshll.u32 [#allocation2], 4
      %s19 = int_to_ptr.vmem [resolvable:$true] %s18
      %21 = dma.hbm_to_vmem [thread:$0]  %s17, 128, %s19, [#allocation3]
    $region5: #{tpu_custom_call.1} parent=1 // pred_fallthru
      _
    // Predicated region
    $region6: #{tpu_custom_call.1} parent=1 // pred_check
      _
    $region7: #{tpu_custom_call.1} parent=1 // pred_check_branch
      %23 = sbr.rel (0) target = $region9
    $region8: #{tpu_custom_call.1} parent=1 // pred_region
      %25 = vsyncadd [#allocation6], 0
      %s26 = sshll.u32 %s1, 4
      %s27 = int_to_ptr.hbm [resolvable:$true] %s26
      %s28 = sshll.u32 [#allocation5], 4
      %s29 = int_to_ptr.vmem [resolvable:$true] %s28
      %34 = dma.hbm_to_vmem [thread:$0]  %s27, 512, %s29, [#allocation6], 128, 128, 8
    $region9: #{tpu_custom_call.1} parent=1 // pred_fallthru
      _
    // Predicated region
    $region10: #{tpu_custom_call.1} parent=1 // pred_check
      _
    $region11: #{tpu_custom_call.1} parent=1 // pred_check_branch
      %36 = sbr.rel (0) target = $region13
    $region12: #{tpu_custom_call.1} parent=1 // pred_region
      _
    $region13: #{tpu_custom_call.1} parent=1 // pred_fallthru
      _
    // Predicated region
    $region14: #{tpu_custom_call.1} parent=1 // pred_check
      _
    $region15: #{tpu_custom_call.1} parent=1 // pred_check_branch
      %38 = sbr.rel (0) target = $region17
    $region16: #{tpu_custom_call.1} parent=1 // pred_region
      %40 = dma.done [#allocation3], 128
    $region17: #{tpu_custom_call.1} parent=1 // pred_fallthru
      _
    // Predicated region
    $region18: #{tpu_custom_call.1} parent=1 // pred_check
      _
    $region19: #{tpu_custom_call.1} parent=1 // pred_check_branch
      %42 = sbr.rel (0) target = $region21
    $region20: #{tpu_custom_call.1} parent=1 // pred_region
      %44 = dma.done [#allocation6], 512
    $region21: #{tpu_custom_call.1} parent=1 // pred_fallthru
      _
    %v45 = vld [vmem:[#allocation2] sm:$0xff]
    %v46 = vld [vmem:[#allocation5] sm:$0xff]
    %v47 = vld [vmem:[#allocation5 + $0x8] sm:$0xff]
    %v48 = vld [vmem:[#allocation5 + $0x10] sm:$0xff]
    %v49 = vld [vmem:[#allocation5 + $0x18] sm:$0xff]
    %v50 = vld [vmem:[%s2] sm:$0x1]
    %v52 = vperm.slane %v50, 0
    %vm54 = vcmask 261120
    %v56 = vsel %vm54, %v45, 0
    %58 = vmatpush.msra.mxu0 0.0
    %59 = vmatpush.msra.mxu0 0.0
    %60 = vmatpush.msra.mxu0 0.0
    %61 = vmatpush.msra.mxu0 0.0
    %62 = vmatpush.msra.mxu0 0.0
    %63 = vmatpush.msra.mxu0 0.0
    %64 = vmatpush.msra.mxu0 0.0
    %65 = vmatpush.msra.mxu0 0.0
    %66 = vmatpush.msra.mxu0 0.0
    %67 = vmatpush.msra.mxu0 0.0
    %68 = vmatpush.msra.mxu0 0.0
    %69 = vmatpush.msra.mxu0 0.0
    %70 = vmatpush.msra.mxu0 %v49
    %71 = vmatpush.msra.mxu0 %v48
    %72 = vmatpush.msra.mxu0 %v47
    %73 = vmatpush.msra.mxu0 %v46
    %74 = vmatmul.f32.gmra.mxu0 %v56
    %v75 = vpop.f32.mrf.mxu0
    %v76 = vadd.f32 %v52, %v75
    %77 = vdwg.mxu0
    %vm78 = vcmask 523264
    %79 = vst.msk [vmem:[#allocation7] sm:$0xff] %vm78, %v76
    // Predicated region
    $region22: #{tpu_custom_call.1} parent=1 // pred_check
      _
    $region23: #{tpu_custom_call.1} parent=1 // pred_check_branch
      %81 = sbr.rel (0) target = $region25
    $region24: #{tpu_custom_call.1} parent=1 // pred_region
      %83 = vsyncadd [#allocation4], 0
      %s85 = sshll.u32 [#allocation7], 4
      %s86 = int_to_ptr.vmem [resolvable:$true] %s85
      %s87 = sshll.u32 %s3, 4
      %s88 = int_to_ptr.hbm [resolvable:$true] %s87
      %90 = dma.vmem_to_hbm [thread:$0]  %s86, 128, %s88, [#allocation4]
    $region25: #{tpu_custom_call.1} parent=1 // pred_fallthru
      _
    // Predicated region
    $region26: #{tpu_custom_call.1} parent=1 // pred_check
      _
    $region27: #{tpu_custom_call.1} parent=1 // pred_check_branch
      %92 = sbr.rel (0) target = $region29
    $region28: #{tpu_custom_call.1} parent=1 // pred_region
      %94 = dma.done [#allocation4], 128
    $region29: #{tpu_custom_call.1} parent=1 // pred_fallthru
      _
    %95 = vsyncpa [#allocation3], 1
    %96 = vsyncpa [#allocation6], 1
    %97 = vsyncpa [#allocation4], 1

</llo_original>
